<compile_context>
chip_gen: v6e
topology: v6e:2x2x1
jax: 0.10.0
libtpu: 0.0.40
codegen_flags: <defaults>
</compile_context>

<pallas_src>
import functools

import jax
import jax.numpy as jnp
from jax.experimental import pallas as pl
from jax.experimental.pallas import tpu as pltpu

HIDDEN = 256
LANE = 128


def _round_up(x, m):
    return (x + m - 1) // m * m


def _mlp_kernel(obs_ref, w1_ref, b1_ref, w2_ref, b2_ref, w3_ref, b3_ref, out_ref):
    # layer1 + tanh   (bf16 operands, f32 accumulate, f32 elementwise)
    h1 = jnp.dot(obs_ref[...], w1_ref[...], preferred_element_type=jnp.float32)
    a1 = jnp.tanh(h1 + b1_ref[...])
    # layer2 + tanh
    h2 = jnp.dot(a1.astype(w2_ref.dtype), w2_ref[...],
                 preferred_element_type=jnp.float32)
    a2 = jnp.tanh(h2 + b2_ref[...])
    # layer3 (logits); padded output columns carry a -1e30 bias -> exp ~ 0
    logits = jnp.dot(a2.astype(w3_ref.dtype), w3_ref[...],
                     preferred_element_type=jnp.float32) + b3_ref[...]
    # numerically stable softmax over the (padded) lane dim
    m = jnp.max(logits, axis=-1, keepdims=True)
    e = jnp.exp(logits - m)
    denom = jnp.sum(e, axis=-1, keepdims=True)
    out_ref[...] = e * pl.reciprocal(denom, approx=True)


@functools.partial(jax.jit, static_argnames=("block_b",))
def feed_forward_nn(obs, w1, b1, w2, b2, w3, b3, block_b=256):
    """Pallas forward of FeedForwardNN: softmax(tanh(tanh(x@W1+b1)@W2+b2)@W3+b3)."""
    B, in_dim = obs.shape
    out_dim = w3.shape[1]
    in_pad = _round_up(in_dim, LANE)
    out_pad = _round_up(out_dim, LANE)

    # Batch tile: multiple of 8 sublanes, capped at block_b; pad B to whole tiles.
    tb = min(block_b, _round_up(B, 8))
    b_pad = _round_up(B, tb)

    f32, bf16 = jnp.float32, jnp.bfloat16

    # Pad + cast operands (zero-padded rows/cols contribute nothing to the dots;
    # padded logit columns are killed with a large-negative finite bias).
    obs_p = jnp.zeros((b_pad, in_pad), bf16).at[:B, :in_dim].set(obs.astype(bf16))
    w1_p = jnp.zeros((in_pad, HIDDEN), bf16).at[:in_dim, :].set(w1.astype(bf16))
    w2_p = w2.astype(bf16)
    w3_p = jnp.zeros((HIDDEN, out_pad), bf16).at[:, :out_dim].set(w3.astype(bf16))
    b1_p = b1.astype(f32).reshape(1, HIDDEN)
    b2_p = b2.astype(f32).reshape(1, HIDDEN)
    b3_p = jnp.full((1, out_pad), -1e30, f32).at[:, :out_dim].set(
        b3.astype(f32).reshape(1, out_dim))

    const = lambda shape: pl.BlockSpec(shape, lambda i: (0, 0))  # VMEM-resident params

    out = pl.pallas_call(
        _mlp_kernel,
        out_shape=jax.ShapeDtypeStruct((b_pad, out_pad), f32),
        grid=(b_pad // tb,),
        in_specs=[
            pl.BlockSpec((tb, in_pad), lambda i: (i, 0)),  # obs tile (pipelined)
            const((in_pad, HIDDEN)),                       # w1
            const((1, HIDDEN)),                            # b1
            const((HIDDEN, HIDDEN)),                       # w2
            const((1, HIDDEN)),                            # b2
            const((HIDDEN, out_pad)),                      # w3
            const((1, out_pad)),                           # b3
        ],
        out_specs=pl.BlockSpec((tb, out_pad), lambda i: (i, 0)),
        compiler_params=pltpu.CompilerParams(
            dimension_semantics=("parallel",),
        ),
    )(obs_p, w1_p, b1_p, w2_p, b2_p, w3_p, b3_p)

    return out[:B, :out_dim]


def init_params(key, in_dim, out_dim):
    """Deterministic init matching nn.Linear default (uniform +/- 1/sqrt(fan_in))."""
    keys = jax.random.split(key, 6)

    def linear(kw, kb, fan_in, fan_out):
        bound = 1.0 / jnp.sqrt(fan_in)
        w = jax.random.uniform(kw, (fan_in, fan_out), jnp.float32, -bound, bound)
        b = jax.random.uniform(kb, (1, fan_out), jnp.float32, -bound, bound)
        return w, b

    w1, b1 = linear(keys[0], keys[1], in_dim, HIDDEN)
    w2, b2 = linear(keys[2], keys[3], HIDDEN, HIDDEN)
    w3, b3 = linear(keys[4], keys[5], HIDDEN, out_dim)
    return w1, b1, w2, b2, w3, b3


def _ref_forward(x, w1, b1, w2, b2, w3, b3):
    a1 = jnp.tanh(x @ w1 + b1)
    a2 = jnp.tanh(a1 @ w2 + b2)
    return jax.nn.softmax(a2 @ w3 + b3, axis=-1)


if __name__ == "__main__":
    key = jax.random.PRNGKey(0)
    k_obs, k_params, k_big = jax.random.split(key, 3)

    B, in_dim, out_dim = 2, 8, 4  # small PPO-style discrete setup
    obs = jax.random.normal(k_obs, (B, in_dim), jnp.float32)
    params = init_params(k_params, in_dim, out_dim)

    out = jax.block_until_ready(feed_forward_nn(obs, *params))
    ref = _ref_forward(obs, *params)
    assert out.shape == (B, out_dim)
    assert jnp.allclose(out, ref, atol=2e-2, rtol=2e-2)
    assert jnp.allclose(jnp.sum(out, axis=-1), 1.0, atol=1e-2)

    # Larger batch exercises the batch grid (two 256-row tiles, pipelined DMA).
    B_big = 512
    obs_big = jax.random.normal(k_big, (B_big, in_dim), jnp.float32)
    out_big = jax.block_until_ready(feed_forward_nn(obs_big, *params))
    ref_big = _ref_forward(obs_big, *params)
    assert out_big.shape == (B_big, out_dim)
    assert jnp.allclose(out_big, ref_big, atol=2e-2, rtol=2e-2)
    assert jnp.allclose(jnp.sum(out_big, axis=-1), 1.0, atol=1e-2)

    print("KERNEL_OK")
</pallas_src>

<mosaic_0001>
module attributes {stable_mosaic.version = 11 : i64} {
  func.func @_mlp_kernel(%arg0: i32, %arg1: memref<8x128xbf16, #tpu.memory_space<vmem>>, %arg2: memref<128x256xbf16, #tpu.memory_space<vmem>>, %arg3: memref<1x256xf32, #tpu.memory_space<vmem>>, %arg4: memref<256x256xbf16, #tpu.memory_space<vmem>>, %arg5: memref<1x256xf32, #tpu.memory_space<vmem>>, %arg6: memref<256x128xbf16, #tpu.memory_space<vmem>>, %arg7: memref<1x128xf32, #tpu.memory_space<vmem>>, %arg8: memref<8x128xf32, #tpu.memory_space<vmem>>) attributes {dimension_semantics = [#tpu.dimension_semantics<parallel>], iteration_bounds = array<i64: 1>, scalar_prefetch = 0 : i64, scratch_operands = 0 : i64, tpu.core_type = #tpu.core_type<tc>, window_params = [{transform_indices = @transform_0, window_bounds = array<i64: 8, 128>}, {pipeline_mode = #tpu.pipeline_mode<synchronous>, transform_indices = @transform_1, window_bounds = array<i64: 128, 256>}, {pipeline_mode = #tpu.pipeline_mode<synchronous>, transform_indices = @transform_2, window_bounds = array<i64: 1, 256>}, {pipeline_mode = #tpu.pipeline_mode<synchronous>, transform_indices = @transform_3, window_bounds = array<i64: 256, 256>}, {pipeline_mode = #tpu.pipeline_mode<synchronous>, transform_indices = @transform_4, window_bounds = array<i64: 1, 256>}, {pipeline_mode = #tpu.pipeline_mode<synchronous>, transform_indices = @transform_5, window_bounds = array<i64: 256, 128>}, {pipeline_mode = #tpu.pipeline_mode<synchronous>, transform_indices = @transform_6, window_bounds = array<i64: 1, 128>}, {transform_indices = @transform_7, window_bounds = array<i64: 8, 128>}]} {
    %c0 = arith.constant 0 : index
    %c0_0 = arith.constant 0 : index
    %0 = vector.load %arg1[%c0, %c0_0] : memref<8x128xbf16, #tpu.memory_space<vmem>>, vector<8x128xbf16>
    %c0_1 = arith.constant 0 : index
    %c0_2 = arith.constant 0 : index
    %1 = vector.load %arg2[%c0_1, %c0_2] : memref<128x256xbf16, #tpu.memory_space<vmem>>, vector<128x256xbf16>
    %cst = arith.constant dense<0.000000e+00> : vector<8x256xf32>
    %2 = tpu.matmul %0, %1, %cst {dimension_numbers = #tpu.dot_dimension_numbers<[1], [0], [0], [1], [0, 0, 1, 1], [], []>} : vector<8x128xbf16>, vector<128x256xbf16>, vector<8x256xf32> -> vector<8x256xf32>
    %c0_3 = arith.constant 0 : index
    %c0_4 = arith.constant 0 : index
    %3 = vector.load %arg3[%c0_3, %c0_4] : memref<1x256xf32, #tpu.memory_space<vmem>>, vector<1x256xf32>
    %4 = vector.broadcast %3 : vector<1x256xf32> to vector<8x256xf32>
    %5 = arith.addf %2, %4 : vector<8x256xf32>
    %6 = math.tanh %5 : vector<8x256xf32>
    %7 = arith.truncf %6 : vector<8x256xf32> to vector<8x256xbf16>
    %c0_5 = arith.constant 0 : index
    %c0_6 = arith.constant 0 : index
    %8 = vector.load %arg4[%c0_5, %c0_6] : memref<256x256xbf16, #tpu.memory_space<vmem>>, vector<256x256xbf16>
    %cst_7 = arith.constant dense<0.000000e+00> : vector<8x256xf32>
    %9 = tpu.matmul %7, %8, %cst_7 {dimension_numbers = #tpu.dot_dimension_numbers<[1], [0], [0], [1], [0, 0, 1, 1], [], []>} : vector<8x256xbf16>, vector<256x256xbf16>, vector<8x256xf32> -> vector<8x256xf32>
    %c0_8 = arith.constant 0 : index
    %c0_9 = arith.constant 0 : index
    %10 = vector.load %arg5[%c0_8, %c0_9] : memref<1x256xf32, #tpu.memory_space<vmem>>, vector<1x256xf32>
    %11 = vector.broadcast %10 : vector<1x256xf32> to vector<8x256xf32>
    %12 = arith.addf %9, %11 : vector<8x256xf32>
    %13 = math.tanh %12 : vector<8x256xf32>
    %14 = arith.truncf %13 : vector<8x256xf32> to vector<8x256xbf16>
    %c0_10 = arith.constant 0 : index
    %c0_11 = arith.constant 0 : index
    %15 = vector.load %arg6[%c0_10, %c0_11] : memref<256x128xbf16, #tpu.memory_space<vmem>>, vector<256x128xbf16>
    %cst_12 = arith.constant dense<0.000000e+00> : vector<8x128xf32>
    %16 = tpu.matmul %14, %15, %cst_12 {dimension_numbers = #tpu.dot_dimension_numbers<[1], [0], [0], [1], [0, 0, 1, 1], [], []>} : vector<8x256xbf16>, vector<256x128xbf16>, vector<8x128xf32> -> vector<8x128xf32>
    %c0_13 = arith.constant 0 : index
    %c0_14 = arith.constant 0 : index
    %17 = vector.load %arg7[%c0_13, %c0_14] : memref<1x128xf32, #tpu.memory_space<vmem>>, vector<1x128xf32>
    %18 = vector.broadcast %17 : vector<1x128xf32> to vector<8x128xf32>
    %19 = arith.addf %16, %18 : vector<8x128xf32>
    %cst_15 = arith.constant dense<0xFF800000> : vector<8xf32>
    %20 = vector.multi_reduction <maximumf>, %19, %cst_15 [1] : vector<8x128xf32> to vector<8xf32>
    %21 = vector.shape_cast %20 : vector<8xf32> to vector<8x1xf32>
    %22 = vector.broadcast %21 : vector<8x1xf32> to vector<8x128xf32>
    %23 = arith.subf %19, %22 : vector<8x128xf32>
    %24 = math.exp %23 : vector<8x128xf32>
    %cst_16 = arith.constant dense<0.000000e+00> : vector<8xf32>
    %25 = vector.multi_reduction <add>, %24, %cst_16 [1] : vector<8x128xf32> to vector<8xf32>
    %26 = vector.shape_cast %25 : vector<8xf32> to vector<8x1xf32>
    %27 = tpu.reciprocal %26 {approx = true} : vector<8x1xf32> -> vector<8x1xf32>
    %28 = vector.broadcast %27 : vector<8x1xf32> to vector<8x128xf32>
    %29 = arith.mulf %24, %28 : vector<8x128xf32>
    %c0_17 = arith.constant 0 : index
    %c0_18 = arith.constant 0 : index
    %30 = vector.load %arg8[%c0_17, %c0_18] : memref<8x128xf32, #tpu.memory_space<vmem>>, vector<8x128xf32>
    tpu.vector_store %arg8[%c0_17, %c0_18], %29 {strides = array<i32>} : memref<8x128xf32, #tpu.memory_space<vmem>>, vector<8x128xf32>,
    return
  }
  func.func @transform_0(%arg0: i32) -> (i32, i32) {
    %c0_i32 = arith.constant 0 : i32
    %c0_i32_0 = arith.constant 0 : i32
    return %arg0, %c0_i32 : i32, i32
  }
  func.func @transform_1(%arg0: i32) -> (i32, i32) {
    %c0_i32 = arith.constant 0 : i32
    %c0_i32_0 = arith.constant 0 : i32
    %c0_i32_1 = arith.constant 0 : i32
    return %c0_i32, %c0_i32_0 : i32, i32
  }
  func.func @transform_2(%arg0: i32) -> (i32, i32) {
    %c0_i32 = arith.constant 0 : i32
    %c0_i32_0 = arith.constant 0 : i32
    %c0_i32_1 = arith.constant 0 : i32
    return %c0_i32, %c0_i32_0 : i32, i32
  }
  func.func @transform_3(%arg0: i32) -> (i32, i32) {
    %c0_i32 = arith.constant 0 : i32
    %c0_i32_0 = arith.constant 0 : i32
    %c0_i32_1 = arith.constant 0 : i32
    return %c0_i32, %c0_i32_0 : i32, i32
  }
  func.func @transform_4(%arg0: i32) -> (i32, i32) {
    %c0_i32 = arith.constant 0 : i32
    %c0_i32_0 = arith.constant 0 : i32
    %c0_i32_1 = arith.constant 0 : i32
    return %c0_i32, %c0_i32_0 : i32, i32
  }
  func.func @transform_5(%arg0: i32) -> (i32, i32) {
    %c0_i32 = arith.constant 0 : i32
    %c0_i32_0 = arith.constant 0 : i32
    %c0_i32_1 = arith.constant 0 : i32
    return %c0_i32, %c0_i32_0 : i32, i32
  }
  func.func @transform_6(%arg0: i32) -> (i32, i32) {
    %c0_i32 = arith.constant 0 : i32
    %c0_i32_0 = arith.constant 0 : i32
    %c0_i32_1 = arith.constant 0 : i32
    return %c0_i32, %c0_i32_0 : i32, i32
  }
  func.func @transform_7(%arg0: i32) -> (i32, i32) {
    %c0_i32 = arith.constant 0 : i32
    %c0_i32_0 = arith.constant 0 : i32
    return %arg0, %c0_i32 : i32, i32
  }
}

</mosaic_0001>

<llo_original>
// kernel: feed_forward_nn.1
$region0: #{feed_forward_nn.1}
  #allocation0 [shape = 'u32[]', space=smem, size = 0x4, offset = 0x4, fixed_abs, tag = 'smem constant byte address 0x4 - core index']
  #allocation1 [shape = 'u32[144,128]{1,0:T(1,128)}', space=vmem, size = 0x12000, scoped, tag = 'internal scratch']
  %s0 = inlined_call_operand.vmem [shape: bf16[8,128], index: 0, kind: input, shape index: {}]
  %s1 = inlined_call_operand.vmem [shape: bf16[128,256], index: 1, kind: input, shape index: {}]
  %s2 = inlined_call_operand.vmem [shape: f32[1,256], index: 2, kind: input, shape index: {}]
  %s3 = inlined_call_operand.vmem [shape: bf16[256,256], index: 3, kind: input, shape index: {}]
  %s4 = inlined_call_operand.vmem [shape: f32[1,256], index: 4, kind: input, shape index: {}]
  %s5 = inlined_call_operand.vmem [shape: bf16[256,128], index: 5, kind: input, shape index: {}]
  %s6 = inlined_call_operand.vmem [shape: f32[1,128], index: 6, kind: input, shape index: {}]
  %s7 = inlined_call_operand.vmem [shape: f32[8,128], index: 7, kind: output, shape index: {}]
  %s8 = sld [smem:[#allocation0]]
  $region38: #{feed_forward_nn.1} parent=0
    _
  %s10 = ssub.s32 1, %s8
  %s11 = scalar_select 0, %s10, %s8
  // Predicated region
  $region2: #{feed_forward_nn.1} parent=0 // pred_check
    _
  $region3: #{feed_forward_nn.1} parent=0 // pred_check_branch
    %13 = sbr.rel (0) target = $region5
  $region4: #{feed_forward_nn.1} parent=0 // pred_region
    _
  $region5: #{feed_forward_nn.1} parent=0 // pred_fallthru
    _
  // Predicated region
  $region6: #{feed_forward_nn.1} parent=0 // pred_check
    _
  $region7: #{feed_forward_nn.1} parent=0 // pred_check_branch
    %15 = sbr.rel (0) target = $region9
  $region8: #{feed_forward_nn.1} parent=0 // pred_region
    _
  $region9: #{feed_forward_nn.1} parent=0 // pred_fallthru
    _
  // Predicated region
  $region10: #{feed_forward_nn.1} parent=0 // pred_check
    _
  $region11: #{feed_forward_nn.1} parent=0 // pred_check_branch
    %17 = sbr.rel (0) target = $region13
  $region12: #{feed_forward_nn.1} parent=0 // pred_region
    _
  $region13: #{feed_forward_nn.1} parent=0 // pred_fallthru
    _
  // Predicated region
  $region14: #{feed_forward_nn.1} parent=0 // pred_check
    _
  $region15: #{feed_forward_nn.1} parent=0 // pred_check_branch
    %19 = sbr.rel (0) target = $region17
  $region16: #{feed_forward_nn.1} parent=0 // pred_region
    _
  $region17: #{feed_forward_nn.1} parent=0 // pred_fallthru
    _
  // Predicated region
  $region18: #{feed_forward_nn.1} parent=0 // pred_check
    _
  $region19: #{feed_forward_nn.1} parent=0 // pred_check_branch
    %21 = sbr.rel (0) target = $region21
  $region20: #{feed_forward_nn.1} parent=0 // pred_region
    _
  $region21: #{feed_forward_nn.1} parent=0 // pred_fallthru
    _
  // Predicated region
  $region22: #{feed_forward_nn.1} parent=0 // pred_check
    _
  $region23: #{feed_forward_nn.1} parent=0 // pred_check_branch
    %23 = sbr.rel (0) target = $region25
  $region24: #{feed_forward_nn.1} parent=0 // pred_region
    _
  $region25: #{feed_forward_nn.1} parent=0 // pred_fallthru
    _
  // Predicated region
  $region26: #{feed_forward_nn.1} parent=0 // pred_check
    _
  $region27: #{feed_forward_nn.1} parent=0 // pred_check_branch
    %25 = sbr.rel (0) target = $region29
  $region28: #{feed_forward_nn.1} parent=0 // pred_region
    _
  $region29: #{feed_forward_nn.1} parent=0 // pred_fallthru
    _
  %v27 = vld [vmem:[%s0] sm:$0xf]
  %v28 = vld [vmem:[%s1] sm:$0xff]
  %v29 = vld [vmem:[%s1 + $0x8] sm:$0xff]
  %v30 = vld [vmem:[%s1 + $0x10] sm:$0xff]
  %v31 = vld [vmem:[%s1 + $0x18] sm:$0xff]
  %v32 = vld [vmem:[%s1 + $0x20] sm:$0xff]
  %v33 = vld [vmem:[%s1 + $0x28] sm:$0xff]
  %v34 = vld [vmem:[%s1 + $0x30] sm:$0xff]
  %v35 = vld [vmem:[%s1 + $0x38] sm:$0xff]
  %v36 = vld [vmem:[%s1 + $0x40] sm:$0xff]
  %v37 = vld [vmem:[%s1 + $0x48] sm:$0xff]
  %v38 = vld [vmem:[%s1 + $0x50] sm:$0xff]
  %v39 = vld [vmem:[%s1 + $0x58] sm:$0xff]
  %v40 = vld [vmem:[%s1 + $0x60] sm:$0xff]
  %v41 = vld [vmem:[%s1 + $0x68] sm:$0xff]
  %v42 = vld [vmem:[%s1 + $0x70] sm:$0xff]
  %v43 = vld [vmem:[%s1 + $0x78] sm:$0xff]
  %v44 = vld [vmem:[%s2] sm:$0x3]
  %v46 = vlaneseq
  %v47 = vshrl.u32 %v46, 7
  %v48 = vsub.s32 0, %v47
  %v49 = vrot.slane %v44, %v48
  %v50 = vlaneseq
  %v51 = vshrl.u32 %v50, 7
  %v52 = vsub.s32 1, %v51
  %v53 = vrot.slane %v44, %v52
  %v72 = vunpack.c.l.b16 %v28
  %v73 = vunpack.c.h.b16 %v28
  %v74 = vunpack.c.l.b16 %v29
  %v75 = vunpack.c.h.b16 %v29
  %v76 = vunpack.c.l.b16 %v30
  %v77 = vunpack.c.h.b16 %v30
  %v78 = vunpack.c.l.b16 %v31
  %v79 = vunpack.c.h.b16 %v31
  %v80 = vunpack.c.l.b16 %v32
  %v81 = vunpack.c.h.b16 %v32
  %v82 = vunpack.c.l.b16 %v33
  %v83 = vunpack.c.h.b16 %v33
  %v84 = vunpack.c.l.b16 %v34
  %v85 = vunpack.c.h.b16 %v34
  %v86 = vunpack.c.l.b16 %v35
  %v87 = vunpack.c.h.b16 %v35
  %v88 = vunpack.c.l.b16 %v36
  %v89 = vunpack.c.h.b16 %v36
  %v90 = vunpack.c.l.b16 %v37
  %v91 = vunpack.c.h.b16 %v37
  %v92 = vunpack.c.l.b16 %v38
  %v93 = vunpack.c.h.b16 %v38
  %v94 = vunpack.c.l.b16 %v39
  %v95 = vunpack.c.h.b16 %v39
  %v96 = vunpack.c.l.b16 %v40
  %v97 = vunpack.c.h.b16 %v40
  %v98 = vunpack.c.l.b16 %v41
  %v99 = vunpack.c.h.b16 %v41
  %v100 = vunpack.c.l.b16 %v42
  %v101 = vunpack.c.h.b16 %v42
  %v102 = vunpack.c.l.b16 %v43
  %v103 = vunpack.c.h.b16 %v43
  %v104 = vpack.c.b16 %v74, %v72
  %v105 = vpack.c.b16 %v75, %v73
  %v106 = vpack.c.b16 %v78, %v76
  %v107 = vpack.c.b16 %v79, %v77
  %v108 = vpack.c.b16 %v82, %v80
  %v109 = vpack.c.b16 %v83, %v81
  %v110 = vpack.c.b16 %v86, %v84
  %v111 = vpack.c.b16 %v87, %v85
  %v112 = vpack.c.b16 %v90, %v88
  %v113 = vpack.c.b16 %v91, %v89
  %v114 = vpack.c.b16 %v94, %v92
  %v115 = vpack.c.b16 %v95, %v93
  %v116 = vpack.c.b16 %v98, %v96
  %v117 = vpack.c.b16 %v99, %v97
  %v118 = vpack.c.b16 %v102, %v100
  %v119 = vpack.c.b16 %v103, %v101
  %136 = vmatprep.subr.bf16.mxu0 %v119
  %137 = vmatpush1.bf16.msra.mxu0 %v118
  %138 = vmatprep.subr.bf16.mxu0 %v117
  %139 = vmatpush1.bf16.msra.mxu0 %v116
  %140 = vmatprep.subr.bf16.mxu0 %v115
  %141 = vmatpush1.bf16.msra.mxu0 %v114
  %142 = vmatprep.subr.bf16.mxu0 %v113
  %143 = vmatpush1.bf16.msra.mxu0 %v112
  %144 = vmatprep.subr.bf16.mxu0 %v111
  %145 = vmatpush1.bf16.msra.mxu0 %v110
  %146 = vmatprep.subr.bf16.mxu0 %v109
  %147 = vmatpush1.bf16.msra.mxu0 %v108
  %148 = vmatprep.subr.bf16.mxu0 %v107
  %149 = vmatpush1.bf16.msra.mxu0 %v106
  %150 = vmatprep.subr.bf16.mxu0 %v105
  %151 = vmatpush1.bf16.msra.mxu0 %v104
  %152 = vmatprep.subr.bf16.mxu0 0
  %153 = vmatpush2.bf16.msra.mxu0 0
  %154 = vmatprep.subr.bf16.mxu0 0
  %155 = vmatpush2.bf16.msra.mxu0 0
  %156 = vmatprep.subr.bf16.mxu0 0
  %157 = vmatpush2.bf16.msra.mxu0 0
  %158 = vmatprep.subr.bf16.mxu0 0
  %159 = vmatpush2.bf16.msra.mxu0 0
  %160 = vmatprep.subr.bf16.mxu0 0
  %161 = vmatpush2.bf16.msra.mxu0 0
  %162 = vmatprep.subr.bf16.mxu0 0
  %163 = vmatpush2.bf16.msra.mxu0 0
  %164 = vmatprep.subr.bf16.mxu0 0
  %165 = vmatpush2.bf16.msra.mxu0 0
  %166 = vmatprep.subr.bf16.mxu0 0
  %167 = vmatpush2.bf16.msra.mxu0 0
  %168 = vmatprep.mubr.bf16.mxu0 0
  %169 = vmatmul.mubr.bf16.gmra.mxu0 %v27
  %v170 = vpop.f32.mrf.mxu0
  %v171 = vadd.f32 %v49, %v170
  %v172 = vpop.f32.mrf.mxu0
  %v173 = vadd.f32 %v53, %v172
  %v174 = vpop.f32.mrf.mxu0
  %v175 = vpop.f32.mrf.mxu0
  %176 = vdwg.mxu0
  %v177 = vtanh.pop %v171
  %v178 = vtanh.pop %v173
  %v179 = vpack.c.bf16 %v177, %v177
  %v180 = vpack.c.bf16 %v178, %v178
  %v181 = vld [vmem:[%s3] sm:$0xff]
  %v182 = vld [vmem:[%s3 + $0x8] sm:$0xff]
  %v183 = vld [vmem:[%s3 + $0x10] sm:$0xff]
  %v184 = vld [vmem:[%s3 + $0x18] sm:$0xff]
  %v185 = vld [vmem:[%s3 + $0x20] sm:$0xff]
  %v186 = vld [vmem:[%s3 + $0x28] sm:$0xff]
  %v187 = vld [vmem:[%s3 + $0x30] sm:$0xff]
  %v188 = vld [vmem:[%s3 + $0x38] sm:$0xff]
  %v189 = vld [vmem:[%s3 + $0x40] sm:$0xff]
  %v190 = vld [vmem:[%s3 + $0x48] sm:$0xff]
  %v191 = vld [vmem:[%s3 + $0x50] sm:$0xff]
  %v192 = vld [vmem:[%s3 + $0x58] sm:$0xff]
  %v193 = vld [vmem:[%s3 + $0x60] sm:$0xff]
  %v194 = vld [vmem:[%s3 + $0x68] sm:$0xff]
  %v195 = vld [vmem:[%s3 + $0x70] sm:$0xff]
  %v196 = vld [vmem:[%s3 + $0x78] sm:$0xff]
  %v197 = vld [vmem:[%s3 + $0x80] sm:$0xff]
  %v198 = vld [vmem:[%s3 + $0x88] sm:$0xff]
  %v199 = vld [vmem:[%s3 + $0x90] sm:$0xff]
  %v200 = vld [vmem:[%s3 + $0x98] sm:$0xff]
  %v201 = vld [vmem:[%s3 + $0xa0] sm:$0xff]
  %v202 = vld [vmem:[%s3 + $0xa8] sm:$0xff]
  %v203 = vld [vmem:[%s3 + $0xb0] sm:$0xff]
  %v204 = vld [vmem:[%s3 + $0xb8] sm:$0xff]
  %v205 = vld [vmem:[%s3 + $0xc0] sm:$0xff]
  %v206 = vld [vmem:[%s3 + $0xc8] sm:$0xff]
  %v207 = vld [vmem:[%s3 + $0xd0] sm:$0xff]
  %v208 = vld [vmem:[%s3 + $0xd8] sm:$0xff]
  %v209 = vld [vmem:[%s3 + $0xe0] sm:$0xff]
  %v210 = vld [vmem:[%s3 + $0xe8] sm:$0xff]
  %v211 = vld [vmem:[%s3 + $0xf0] sm:$0xff]
  %v212 = vld [vmem:[%s3 + $0xf8] sm:$0xff]
  %v213 = vld [vmem:[%s4] sm:$0x3]
  %v215 = vlaneseq
  %v216 = vshrl.u32 %v215, 7
  %v217 = vsub.s32 0, %v216
  %v218 = vrot.slane %v213, %v217
  %v219 = vlaneseq
  %v220 = vshrl.u32 %v219, 7
  %v221 = vsub.s32 1, %v220
  %v222 = vrot.slane %v213, %v221
  %v257 = vunpack.c.l.b16 %v181
  %v258 = vunpack.c.h.b16 %v181
  %v259 = vunpack.c.l.b16 %v182
  %v260 = vunpack.c.h.b16 %v182
  %v261 = vunpack.c.l.b16 %v183
  %v262 = vunpack.c.h.b16 %v183
  %v263 = vunpack.c.l.b16 %v184
  %v264 = vunpack.c.h.b16 %v184
  %v265 = vunpack.c.l.b16 %v185
  %v266 = vunpack.c.h.b16 %v185
  %v267 = vunpack.c.l.b16 %v186
  %v268 = vunpack.c.h.b16 %v186
  %v269 = vunpack.c.l.b16 %v187
  %v270 = vunpack.c.h.b16 %v187
  %v271 = vunpack.c.l.b16 %v188
  %v272 = vunpack.c.h.b16 %v188
  %v273 = vunpack.c.l.b16 %v189
  %v274 = vunpack.c.h.b16 %v189
  %v275 = vunpack.c.l.b16 %v190
  %v276 = vunpack.c.h.b16 %v190
  %v277 = vunpack.c.l.b16 %v191
  %v278 = vunpack.c.h.b16 %v191
  %v279 = vunpack.c.l.b16 %v192
  %v280 = vunpack.c.h.b16 %v192
  %v281 = vunpack.c.l.b16 %v193
  %v282 = vunpack.c.h.b16 %v193
  %v283 = vunpack.c.l.b16 %v194
  %v284 = vunpack.c.h.b16 %v194
  %v285 = vunpack.c.l.b16 %v195
  %v286 = vunpack.c.h.b16 %v195
  %v287 = vunpack.c.l.b16 %v196
  %v288 = vunpack.c.h.b16 %v196
  %v289 = vunpack.c.l.b16 %v197
  %v290 = vunpack.c.h.b16 %v197
  %v291 = vunpack.c.l.b16 %v198
  %v292 = vunpack.c.h.b16 %v198
  %v293 = vunpack.c.l.b16 %v199
  %v294 = vunpack.c.h.b16 %v199
  %v295 = vunpack.c.l.b16 %v200
  %v296 = vunpack.c.h.b16 %v200
  %v297 = vunpack.c.l.b16 %v201
  %v298 = vunpack.c.h.b16 %v201
  %v299 = vunpack.c.l.b16 %v202
  %v300 = vunpack.c.h.b16 %v202
  %v301 = vunpack.c.l.b16 %v203
  %v302 = vunpack.c.h.b16 %v203
  %v303 = vunpack.c.l.b16 %v204
  %v304 = vunpack.c.h.b16 %v204
  %v305 = vunpack.c.l.b16 %v205
  %v306 = vunpack.c.h.b16 %v205
  %v307 = vunpack.c.l.b16 %v206
  %v308 = vunpack.c.h.b16 %v206
  %v309 = vunpack.c.l.b16 %v207
  %v310 = vunpack.c.h.b16 %v207
  %v311 = vunpack.c.l.b16 %v208
  %v312 = vunpack.c.h.b16 %v208
  %v313 = vunpack.c.l.b16 %v209
  %v314 = vunpack.c.h.b16 %v209
  %v315 = vunpack.c.l.b16 %v210
  %v316 = vunpack.c.h.b16 %v210
  %v317 = vunpack.c.l.b16 %v211
  %v318 = vunpack.c.h.b16 %v211
  %v319 = vunpack.c.l.b16 %v212
  %v320 = vunpack.c.h.b16 %v212
  %v321 = vpack.c.b16 %v259, %v257
  %v322 = vpack.c.b16 %v260, %v258
  %v323 = vpack.c.b16 %v263, %v261
  %v324 = vpack.c.b16 %v264, %v262
  %v325 = vpack.c.b16 %v267, %v265
  %v326 = vpack.c.b16 %v268, %v266
  %v327 = vpack.c.b16 %v271, %v269
  %v328 = vpack.c.b16 %v272, %v270
  %v329 = vpack.c.b16 %v275, %v273
  %v330 = vpack.c.b16 %v276, %v274
  %v331 = vpack.c.b16 %v279, %v277
  %v332 = vpack.c.b16 %v280, %v278
  %v333 = vpack.c.b16 %v283, %v281
  %v334 = vpack.c.b16 %v284, %v282
  %v335 = vpack.c.b16 %v287, %v285
  %v336 = vpack.c.b16 %v288, %v286
  %v337 = vpack.c.b16 %v291, %v289
  %v338 = vpack.c.b16 %v292, %v290
  %v339 = vpack.c.b16 %v295, %v293
  %v340 = vpack.c.b16 %v296, %v294
  %v341 = vpack.c.b16 %v299, %v297
  %v342 = vpack.c.b16 %v300, %v298
  %v343 = vpack.c.b16 %v303, %v301
  %v344 = vpack.c.b16 %v304, %v302
  %v345 = vpack.c.b16 %v307, %v305
  %v346 = vpack.c.b16 %v308, %v306
  %v347 = vpack.c.b16 %v311, %v309
  %v348 = vpack.c.b16 %v312, %v310
  %v349 = vpack.c.b16 %v315, %v313
  %v350 = vpack.c.b16 %v316, %v314
  %v351 = vpack.c.b16 %v319, %v317
  %v352 = vpack.c.b16 %v320, %v318
  %385 = vmatprep.subr.bf16.mxu0 %v336
  %386 = vmatpush1.bf16.msra.mxu0 %v335
  %387 = vmatprep.subr.bf16.mxu0 %v334
  %388 = vmatpush1.bf16.msra.mxu0 %v333
  %389 = vmatprep.subr.bf16.mxu0 %v332
  %390 = vmatpush1.bf16.msra.mxu0 %v331
  %391 = vmatprep.subr.bf16.mxu0 %v330
  %392 = vmatpush1.bf16.msra.mxu0 %v329
  %393 = vmatprep.subr.bf16.mxu0 %v328
  %394 = vmatpush1.bf16.msra.mxu0 %v327
  %395 = vmatprep.subr.bf16.mxu0 %v326
  %396 = vmatpush1.bf16.msra.mxu0 %v325
  %397 = vmatprep.subr.bf16.mxu0 %v324
  %398 = vmatpush1.bf16.msra.mxu0 %v323
  %399 = vmatprep.subr.bf16.mxu0 %v322
  %400 = vmatpush1.bf16.msra.mxu0 %v321
  %401 = vmatprep.subr.bf16.mxu0 %v352
  %402 = vmatpush2.bf16.msra.mxu0 %v351
  %403 = vmatprep.subr.bf16.mxu0 %v350
  %404 = vmatpush2.bf16.msra.mxu0 %v349
  %405 = vmatprep.subr.bf16.mxu0 %v348
  %406 = vmatpush2.bf16.msra.mxu0 %v347
  %407 = vmatprep.subr.bf16.mxu0 %v346
  %408 = vmatpush2.bf16.msra.mxu0 %v345
  %409 = vmatprep.subr.bf16.mxu0 %v344
  %410 = vmatpush2.bf16.msra.mxu0 %v343
  %411 = vmatprep.subr.bf16.mxu0 %v342
  %412 = vmatpush2.bf16.msra.mxu0 %v341
  %413 = vmatprep.subr.bf16.mxu0 %v340
  %414 = vmatpush2.bf16.msra.mxu0 %v339
  %415 = vmatprep.subr.bf16.mxu0 %v338
  %416 = vmatpush2.bf16.msra.mxu0 %v337
  %417 = vmatprep.mubr.bf16.mxu0 %v180
  %418 = vmatmul.mubr.bf16.gmra.mxu0 %v179
  %v419 = vpop.f32.mrf.mxu0
  %v420 = vadd.f32 %v218, %v419
  %v421 = vpop.f32.mrf.mxu0
  %v422 = vadd.f32 %v222, %v421
  %v423 = vpop.f32.mrf.mxu0
  %v424 = vpop.f32.mrf.mxu0
  %425 = vdwg.mxu0
  %v426 = vtanh.pop %v420
  %v427 = vtanh.pop %v422
  %v428 = vpack.c.bf16 %v426, %v426
  %v429 = vpack.c.bf16 %v427, %v427
  %v430 = vld [vmem:[%s5] sm:$0xf]
  %v431 = vld [vmem:[%s5 + $0x4] sm:$0xf]
  %v432 = vld [vmem:[%s5 + $0x8] sm:$0xf]
  %v433 = vld [vmem:[%s5 + $0xc] sm:$0xf]
  %v434 = vld [vmem:[%s5 + $0x10] sm:$0xf]
  %v435 = vld [vmem:[%s5 + $0x14] sm:$0xf]
  %v436 = vld [vmem:[%s5 + $0x18] sm:$0xf]
  %v437 = vld [vmem:[%s5 + $0x1c] sm:$0xf]
  %v438 = vld [vmem:[%s5 + $0x20] sm:$0xf]
  %v439 = vld [vmem:[%s5 + $0x24] sm:$0xf]
  %v440 = vld [vmem:[%s5 + $0x28] sm:$0xf]
  %v441 = vld [vmem:[%s5 + $0x2c] sm:$0xf]
  %v442 = vld [vmem:[%s5 + $0x30] sm:$0xf]
  %v443 = vld [vmem:[%s5 + $0x34] sm:$0xf]
  %v444 = vld [vmem:[%s5 + $0x38] sm:$0xf]
  %v445 = vld [vmem:[%s5 + $0x3c] sm:$0xf]
  %v446 = vld [vmem:[%s5 + $0x40] sm:$0xf]
  %v447 = vld [vmem:[%s5 + $0x44] sm:$0xf]
  %v448 = vld [vmem:[%s5 + $0x48] sm:$0xf]
  %v449 = vld [vmem:[%s5 + $0x4c] sm:$0xf]
  %v450 = vld [vmem:[%s5 + $0x50] sm:$0xf]
  %v451 = vld [vmem:[%s5 + $0x54] sm:$0xf]
  %v452 = vld [vmem:[%s5 + $0x58] sm:$0xf]
  %v453 = vld [vmem:[%s5 + $0x5c] sm:$0xf]
  %v454 = vld [vmem:[%s5 + $0x60] sm:$0xf]
  %v455 = vld [vmem:[%s5 + $0x64] sm:$0xf]
  %v456 = vld [vmem:[%s5 + $0x68] sm:$0xf]
  %v457 = vld [vmem:[%s5 + $0x6c] sm:$0xf]
  %v458 = vld [vmem:[%s5 + $0x70] sm:$0xf]
  %v459 = vld [vmem:[%s5 + $0x74] sm:$0xf]
  %v460 = vld [vmem:[%s5 + $0x78] sm:$0xf]
  %v461 = vld [vmem:[%s5 + $0x7c] sm:$0xf]
  %v462 = vld [vmem:[%s6] sm:$0x1]
  %v464 = vlaneseq
  %v465 = vshrl.u32 %v464, 7
  %v466 = vsub.s32 0, %v465
  %v467 = vrot.slane %v462, %v466
  %v501 = vunpack.c.l.b16 %v430
  %v502 = vunpack.c.l.b16 %v431
  %v503 = vunpack.c.l.b16 %v432
  %v504 = vunpack.c.l.b16 %v433
  %v505 = vunpack.c.l.b16 %v434
  %v506 = vunpack.c.l.b16 %v435
  %v507 = vunpack.c.l.b16 %v436
  %v508 = vunpack.c.l.b16 %v437
  %v509 = vunpack.c.l.b16 %v438
  %v510 = vunpack.c.l.b16 %v439
  %v511 = vunpack.c.l.b16 %v440
  %v512 = vunpack.c.l.b16 %v441
  %v513 = vunpack.c.l.b16 %v442
  %v514 = vunpack.c.l.b16 %v443
  %v515 = vunpack.c.l.b16 %v444
  %v516 = vunpack.c.l.b16 %v445
  %v517 = vunpack.c.l.b16 %v446
  %v518 = vunpack.c.l.b16 %v447
  %v519 = vunpack.c.l.b16 %v448
  %v520 = vunpack.c.l.b16 %v449
  %v521 = vunpack.c.l.b16 %v450
  %v522 = vunpack.c.l.b16 %v451
  %v523 = vunpack.c.l.b16 %v452
  %v524 = vunpack.c.l.b16 %v453
  %v525 = vunpack.c.l.b16 %v454
  %v526 = vunpack.c.l.b16 %v455
  %v527 = vunpack.c.l.b16 %v456
  %v528 = vunpack.c.l.b16 %v457
  %v529 = vunpack.c.l.b16 %v458
  %v530 = vunpack.c.l.b16 %v459
  %v531 = vunpack.c.l.b16 %v460
  %v532 = vunpack.c.l.b16 %v461
  %v533 = vpack.c.b16 %v502, %v501
  %v534 = vpack.c.b16 %v504, %v503
  %v535 = vpack.c.b16 %v506, %v505
  %v536 = vpack.c.b16 %v508, %v507
  %v537 = vpack.c.b16 %v510, %v509
  %v538 = vpack.c.b16 %v512, %v511
  %v539 = vpack.c.b16 %v514, %v513
  %v540 = vpack.c.b16 %v516, %v515
  %v541 = vpack.c.b16 %v518, %v517
  %v542 = vpack.c.b16 %v520, %v519
  %v543 = vpack.c.b16 %v522, %v521
  %v544 = vpack.c.b16 %v524, %v523
  %v545 = vpack.c.b16 %v526, %v525
  %v546 = vpack.c.b16 %v528, %v527
  %v547 = vpack.c.b16 %v530, %v529
  %v548 = vpack.c.b16 %v532, %v531
  %565 = vmatprep.subr.bf16.mxu0 0
  %566 = vmatpush1.bf16.msra.mxu0 %v540
  %567 = vmatprep.subr.bf16.mxu0 0
  %568 = vmatpush1.bf16.msra.mxu0 %v539
  %569 = vmatprep.subr.bf16.mxu0 0
  %570 = vmatpush1.bf16.msra.mxu0 %v538
  %571 = vmatprep.subr.bf16.mxu0 0
  %572 = vmatpush1.bf16.msra.mxu0 %v537
  %573 = vmatprep.subr.bf16.mxu0 0
  %574 = vmatpush1.bf16.msra.mxu0 %v536
  %575 = vmatprep.subr.bf16.mxu0 0
  %576 = vmatpush1.bf16.msra.mxu0 %v535
  %577 = vmatprep.subr.bf16.mxu0 0
  %578 = vmatpush1.bf16.msra.mxu0 %v534
  %579 = vmatprep.subr.bf16.mxu0 0
  %580 = vmatpush1.bf16.msra.mxu0 %v533
  %581 = vmatprep.subr.bf16.mxu0 0
  %582 = vmatpush2.bf16.msra.mxu0 %v548
  %583 = vmatprep.subr.bf16.mxu0 0
  %584 = vmatpush2.bf16.msra.mxu0 %v547
  %585 = vmatprep.subr.bf16.mxu0 0
  %586 = vmatpush2.bf16.msra.mxu0 %v546
  %587 = vmatprep.subr.bf16.mxu0 0
  %588 = vmatpush2.bf16.msra.mxu0 %v545
  %589 = vmatprep.subr.bf16.mxu0 0
  %590 = vmatpush2.bf16.msra.mxu0 %v544
  %591 = vmatprep.subr.bf16.mxu0 0
  %592 = vmatpush2.bf16.msra.mxu0 %v543
  %593 = vmatprep.subr.bf16.mxu0 0
  %594 = vmatpush2.bf16.msra.mxu0 %v542
  %595 = vmatprep.subr.bf16.mxu0 0
  %596 = vmatpush2.bf16.msra.mxu0 %v541
  %597 = vmatprep.mubr.bf16.mxu0 %v429
  %598 = vmatmul.mubr.bf16.gmra.mxu0 %v428
  %v599 = vpop.f32.mrf.mxu0
  %v600 = vadd.f32 %v467, %v599
  %v601 = vpop.f32.mrf.mxu0
  %v602 = vpop.f32.mrf.mxu0
  %v603 = vpop.f32.mrf.mxu0
  %604 = vdwg.mxu0
  %605 = vmax.xlane.f32.xlu0 %v600
  %v606 = vpop.xlane.xlu0 %605
  %v607 = vsub.f32 %v600, %v606
  %v608 = vmul.f32 %v607, 1.442695
  %v609 = vpow.pop %v608
  %610 = vadd.xlane.f32.xlu0 %v609
  %v611 = vpop.xlane.xlu0 %610
  %v612 = vrcp.pop %v611
  %v613 = vmul.f32 %v609, %v612
  %614 = vst [vmem:[%s7] sm:$0xff] %v613
  // Predicated region
  $region30: #{feed_forward_nn.1} parent=0 // pred_check
    _
  $region31: #{feed_forward_nn.1} parent=0 // pred_check_branch
    %616 = sbr.rel (0) target = $region33
  $region32: #{feed_forward_nn.1} parent=0 // pred_region
    _
  $region33: #{feed_forward_nn.1} parent=0 // pred_fallthru
    _
  // Predicated region
  $region34: #{feed_forward_nn.1} parent=0 // pred_check
    _
  $region35: #{feed_forward_nn.1} parent=0 // pred_check_branch
    %618 = sbr.rel (0) target = $region37
  $region36: #{feed_forward_nn.1} parent=0 // pred_region
    _
  $region37: #{feed_forward_nn.1} parent=0 // pred_fallthru
    _

</llo_original>
